<compile_context>
chip_gen: v7x
topology: tpu7x:2x2x1
jax: 0.10.0
libtpu: 0.0.40
codegen_flags: <defaults>
</compile_context>

<pallas_src>
import functools
import math

import jax
import jax.numpy as jnp
from jax.experimental import pallas as pl
from jax.experimental.pallas import tpu as pltpu


def _myloss_kernel(yt_ref, yp_ref, out_ref, acc0_ref, acc1_ref, *, d, p, inv_n):
    i = pl.program_id(0)

    @pl.when(i == 0)
    def _init():
        acc0_ref[...] = jnp.zeros_like(acc0_ref)
        acc1_ref[...] = jnp.zeros_like(acc1_ref)

    # DMA happened in the input dtype; upcast in-register for the math.
    yt = yt_ref[...].astype(jnp.float32)     # [TB, 2*d]
    yp = yp_ref[...].astype(jnp.float32)
    diff = yt - yp
    sq = diff * diff

    # Channel 0 = lanes [:d], channel 1 = lanes [d:]; per-tile partial sums.
    acc0_ref[...] += jnp.sum(sq[:, :d])
    acc1_ref[...] += jnp.sum(sq[:, d:])

    @pl.when(i == pl.num_programs(0) - 1)
    def _finalize():
        # Apply 1/N and the p / (10-p) weights once, in the epilogue.
        out_ref[...] = ((p * inv_n) * acc0_ref[...]
                        + ((10.0 - p) * inv_n) * acc1_ref[...])


def my_loss(y_true, y_pred, partition, *, tile_rows=None):
    """Pallas implementation of MyLoss(partition).forward(y_true, y_pred)."""
    assert y_true.shape == y_pred.shape
    assert y_true.ndim >= 2 and y_true.shape[1] >= 2, "MyLoss indexes channels 0 and 1"

    B = y_true.shape[0]
    d = int(math.prod(y_true.shape[2:]))          # per-channel trailing size (1 if none)

    # Lane-dense layout [B, 2*d]; for C == 2 this reshape is free (contiguous).
    yt = y_true[:, :2].reshape(B, 2 * d)
    yp = y_pred[:, :2].reshape(B, 2 * d)

    # Pick the largest row-tile that keeps 2 inputs x 2 pipeline buffers well under
    # the scoped VMEM limit on every generation (v7x has only 64 MiB physical VMEM).
    row_bytes = 2 * d * jnp.dtype(yt.dtype).itemsize
    if tile_rows is None:
        target_tile_bytes = 6 * 1024 * 1024       # ~24 MiB total with double-buffering
        tb = max(8, (target_tile_bytes // max(row_bytes, 1)) // 8 * 8)
        tb = min(tb, 1024)
    else:
        tb = max(8, (int(tile_rows) // 8) * 8)
    tb = min(tb, pl.cdiv(B, 8) * 8)

    num_tiles = pl.cdiv(B, tb)
    b_pad = num_tiles * tb
    if b_pad != B:
        # Zero rows contribute nothing to the sum of squared differences.
        pad = ((0, b_pad - B), (0, 0))
        yt = jnp.pad(yt, pad)
        yp = jnp.pad(yp, pad)

    inv_n = 1.0 / float(B * d)                    # true (unpadded) mean denominator
    kernel = functools.partial(_myloss_kernel, d=d, p=float(partition), inv_n=inv_n)

    out = pl.pallas_call(
        kernel,
        out_shape=jax.ShapeDtypeStruct((1, 1), jnp.float32),
        grid_spec=pltpu.PrefetchScalarGridSpec(
            num_scalar_prefetch=0,
            grid=(num_tiles,),
            in_specs=[
                pl.BlockSpec((tb, 2 * d), lambda i: (i, 0)),
                pl.BlockSpec((tb, 2 * d), lambda i: (i, 0)),
            ],
            out_specs=pl.BlockSpec((1, 1), lambda i: (0, 0)),   # resident accumulator block
            scratch_shapes=[
                pltpu.VMEM((1, 1), jnp.float32),                # channel-0 partial sum
                pltpu.VMEM((1, 1), jnp.float32),                # channel-1 partial sum
            ],
        ),
        compiler_params=pltpu.CompilerParams(
            dimension_semantics=("arbitrary",),                 # reduction into resident block
            vmem_limit_bytes=48 * 1024 * 1024,                  # safe on v5e/v6e/v7x
        ),
    )(yt, yp)
    return out[0, 0]


def my_loss_ref(y_true, y_pred, partition):
    """Plain-JAX reference (mirrors torch.nn.MSELoss mean reduction)."""
    mse0 = jnp.mean((y_true[:, 0].astype(jnp.float32) - y_pred[:, 0].astype(jnp.float32)) ** 2)
    mse1 = jnp.mean((y_true[:, 1].astype(jnp.float32) - y_pred[:, 1].astype(jnp.float32)) ** 2)
    return partition * mse0 + (10.0 - partition) * mse1


if __name__ == "__main__":
    key = jax.random.PRNGKey(0)
    k1, k2 = jax.random.split(key)

    B, C, D = 8, 2, 128
    partition = 3.0

    y_true = jax.random.normal(k1, (B, C, D), dtype=jnp.float32)
    y_pred = jax.random.normal(k2, (B, C, D), dtype=jnp.float32)

    out = jax.block_until_ready(my_loss(y_true, y_pred, partition))
    ref = my_loss_ref(y_true, y_pred, partition)
    assert jnp.allclose(out, ref, rtol=1e-5, atol=1e-5), (out, ref)

    # Exercise the multi-tile accumulator path and ragged-batch zero-padding.
    B2 = 20
    y_true2 = jax.random.normal(jax.random.PRNGKey(1), (B2, C, D), dtype=jnp.float32)
    y_pred2 = jax.random.normal(jax.random.PRNGKey(2), (B2, C, D), dtype=jnp.float32)
    out2 = jax.block_until_ready(my_loss(y_true2, y_pred2, partition, tile_rows=8))
    ref2 = my_loss_ref(y_true2, y_pred2, partition)
    assert jnp.allclose(out2, ref2, rtol=1e-5, atol=1e-5), (out2, ref2)

    print("KERNEL_OK")
</pallas_src>

<mosaic_0001>
module attributes {stable_mosaic.version = 11 : i64} {
  func.func @_myloss_kernel(%arg0: i32, %arg1: memref<8x256xf32, #tpu.memory_space<vmem>>, %arg2: memref<8x256xf32, #tpu.memory_space<vmem>>, %arg3: memref<1x1xf32, #tpu.memory_space<vmem>>, %arg4: memref<1x1xf32, #tpu.memory_space<vmem>>, %arg5: memref<1x1xf32, #tpu.memory_space<vmem>>) attributes {dimension_semantics = [#tpu.dimension_semantics<arbitrary>], iteration_bounds = array<i64: 1>, scalar_prefetch = 0 : i64, scratch_operands = 2 : i64, tpu.core_type = #tpu.core_type<tc>, window_params = [{transform_indices = @transform_0, window_bounds = array<i64: 8, 256>}, {transform_indices = @transform_1, window_bounds = array<i64: 8, 256>}, {pipeline_mode = #tpu.pipeline_mode<synchronous>, transform_indices = @transform_2, window_bounds = array<i64: 1, 1>}]} {
    %c0_i32 = arith.constant 0 : i32
    %0 = arith.cmpi eq, %arg0, %c0_i32 : i32
    %1 = arith.extui %0 : i1 to i32
    %c0_i32_0 = arith.constant 0 : i32
    %2 = arith.cmpi ne, %1, %c0_i32_0 : i32
    scf.if %2 {
      %cst_15 = arith.constant 0.000000e+00 : f32
      %28 = vector.broadcast %cst_15 : f32 to vector<1x1xf32>
      %c0_16 = arith.constant 0 : index
      %c0_17 = arith.constant 0 : index
      %29 = vector.load %arg4[%c0_16, %c0_17] : memref<1x1xf32, #tpu.memory_space<vmem>>, vector<1x1xf32>
      tpu.vector_store %arg4[%c0_16, %c0_17], %28 {strides = array<i32>} : memref<1x1xf32, #tpu.memory_space<vmem>>, vector<1x1xf32>,
      %cst_18 = arith.constant 0.000000e+00 : f32
      %30 = vector.broadcast %cst_18 : f32 to vector<1x1xf32>
      %c0_19 = arith.constant 0 : index
      %c0_20 = arith.constant 0 : index
      %31 = vector.load %arg5[%c0_19, %c0_20] : memref<1x1xf32, #tpu.memory_space<vmem>>, vector<1x1xf32>
      tpu.vector_store %arg5[%c0_19, %c0_20], %30 {strides = array<i32>} : memref<1x1xf32, #tpu.memory_space<vmem>>, vector<1x1xf32>,
    } else {
    }
    %c0 = arith.constant 0 : index
    %c0_1 = arith.constant 0 : index
    %3 = vector.load %arg1[%c0, %c0_1] : memref<8x256xf32, #tpu.memory_space<vmem>>, vector<8x256xf32>
    %c0_2 = arith.constant 0 : index
    %c0_3 = arith.constant 0 : index
    %4 = vector.load %arg2[%c0_2, %c0_3] : memref<8x256xf32, #tpu.memory_space<vmem>>, vector<8x256xf32>
    %5 = arith.subf %3, %4 : vector<8x256xf32>
    %6 = arith.mulf %5, %5 : vector<8x256xf32>
    %c0_4 = arith.constant 0 : index
    %c0_5 = arith.constant 0 : index
    %7 = vector.load %arg4[%c0_4, %c0_5] : memref<1x1xf32, #tpu.memory_space<vmem>>, vector<1x1xf32>
    %8 = vector.extract_strided_slice %6 {offsets = [0, 0], sizes = [8, 128], strides = [1, 1]} : vector<8x256xf32> to vector<8x128xf32>
    %9 = vector.shape_cast %8 : vector<8x128xf32> to vector<1x8x128xf32>
    %cst = arith.constant dense<0.000000e+00> : vector<1xf32>
    %10 = vector.multi_reduction <add>, %9, %cst [1, 2] : vector<1x8x128xf32> to vector<1xf32>
    %11 = vector.shape_cast %10 : vector<1xf32> to vector<1x1x1xf32>
    %12 = vector.extract %11[0, 0, 0] : f32 from vector<1x1x1xf32>
    %13 = vector.broadcast %12 : f32 to vector<1x1xf32>
    %14 = arith.addf %7, %13 : vector<1x1xf32>
    %c0_6 = arith.constant 0 : index
    %c0_7 = arith.constant 0 : index
    %15 = vector.load %arg4[%c0_6, %c0_7] : memref<1x1xf32, #tpu.memory_space<vmem>>, vector<1x1xf32>
    tpu.vector_store %arg4[%c0_6, %c0_7], %14 {strides = array<i32>} : memref<1x1xf32, #tpu.memory_space<vmem>>, vector<1x1xf32>,
    %c0_8 = arith.constant 0 : index
    %c0_9 = arith.constant 0 : index
    %16 = vector.load %arg5[%c0_8, %c0_9] : memref<1x1xf32, #tpu.memory_space<vmem>>, vector<1x1xf32>
    %17 = vector.extract_strided_slice %6 {offsets = [0, 128], sizes = [8, 128], strides = [1, 1]} : vector<8x256xf32> to vector<8x128xf32>
    %18 = vector.shape_cast %17 : vector<8x128xf32> to vector<1x8x128xf32>
    %cst_10 = arith.constant dense<0.000000e+00> : vector<1xf32>
    %19 = vector.multi_reduction <add>, %18, %cst_10 [1, 2] : vector<1x8x128xf32> to vector<1xf32>
    %20 = vector.shape_cast %19 : vector<1xf32> to vector<1x1x1xf32>
    %21 = vector.extract %20[0, 0, 0] : f32 from vector<1x1x1xf32>
    %22 = vector.broadcast %21 : f32 to vector<1x1xf32>
    %23 = arith.addf %16, %22 : vector<1x1xf32>
    %c0_11 = arith.constant 0 : index
    %c0_12 = arith.constant 0 : index
    %24 = vector.load %arg5[%c0_11, %c0_12] : memref<1x1xf32, #tpu.memory_space<vmem>>, vector<1x1xf32>
    tpu.vector_store %arg5[%c0_11, %c0_12], %23 {strides = array<i32>} : memref<1x1xf32, #tpu.memory_space<vmem>>, vector<1x1xf32>,
    %c0_i32_13 = arith.constant 0 : i32
    %25 = arith.cmpi eq, %arg0, %c0_i32_13 : i32
    %26 = arith.extui %25 : i1 to i32
    %c0_i32_14 = arith.constant 0 : i32
    %27 = arith.cmpi ne, %26, %c0_i32_14 : i32
    scf.if %27 {
      %c0_15 = arith.constant 0 : index
      %c0_16 = arith.constant 0 : index
      %28 = vector.load %arg4[%c0_15, %c0_16] : memref<1x1xf32, #tpu.memory_space<vmem>>, vector<1x1xf32>
      %cst_17 = arith.constant 0.0029296875 : f32
      %29 = vector.broadcast %cst_17 : f32 to vector<1x1xf32>
      %30 = arith.mulf %29, %28 : vector<1x1xf32>
      %c0_18 = arith.constant 0 : index
      %c0_19 = arith.constant 0 : index
      %31 = vector.load %arg5[%c0_18, %c0_19] : memref<1x1xf32, #tpu.memory_space<vmem>>, vector<1x1xf32>
      %cst_20 = arith.constant 0.0068359375 : f32
      %32 = vector.broadcast %cst_20 : f32 to vector<1x1xf32>
      %33 = arith.mulf %32, %31 : vector<1x1xf32>
      %34 = arith.addf %30, %33 : vector<1x1xf32>
      %c0_21 = arith.constant 0 : index
      %c0_22 = arith.constant 0 : index
      %35 = vector.load %arg3[%c0_21, %c0_22] : memref<1x1xf32, #tpu.memory_space<vmem>>, vector<1x1xf32>
      tpu.vector_store %arg3[%c0_21, %c0_22], %34 {strides = array<i32>} : memref<1x1xf32, #tpu.memory_space<vmem>>, vector<1x1xf32>,
    } else {
    }
    return
  }
  func.func @transform_0(%arg0: i32) -> (i32, i32) {
    %c0_i32 = arith.constant 0 : i32
    %c0_i32_0 = arith.constant 0 : i32
    return %arg0, %c0_i32 : i32, i32
  }
  func.func @transform_1(%arg0: i32) -> (i32, i32) {
    %c0_i32 = arith.constant 0 : i32
    %c0_i32_0 = arith.constant 0 : i32
    return %arg0, %c0_i32 : i32, i32
  }
  func.func @transform_2(%arg0: i32) -> (i32, i32) {
    %c0_i32 = arith.constant 0 : i32
    %c0_i32_0 = arith.constant 0 : i32
    %c0_i32_1 = arith.constant 0 : i32
    return %c0_i32, %c0_i32_0 : i32, i32
  }
}

</mosaic_0001>

<llo_original>
// kernel: tpu_custom_call.1
$region0: #{tpu_custom_call.1}
  #allocation0 [shape = 'u32[]', space=smem, size = 0x4, offset = 0x4, fixed_abs, tag = 'smem constant byte address 0x4 - core index']
  #allocation1 [shape = 'u32[144,128]{1,0:T(1,128)}', space=vmem, size = 0x12000, scoped, tag = 'internal scratch']
  #allocation2 [shape = 'f32[1,1]{1,0:T(1,128)}', space=vmem, size = 0x200, scoped, tag = 'scratch operand']
  #allocation3 [shape = 'f32[1,1]{1,0:T(1,128)}', space=vmem, size = 0x200, scoped, tag = 'scratch operand']
  %s0 = inlined_call_operand.hbm [shape: f32[8,256], index: 0, kind: input, shape index: {}]
  %s1 = inlined_call_operand.hbm [shape: f32[8,256], index: 1, kind: input, shape index: {}]
  %s2 = inlined_call_operand.hbm [shape: f32[1,1], index: 2, kind: output, shape index: {}]
  %s3 = sld [smem:[#allocation0]]
  $region34: #{tpu_custom_call.1} parent=0
    _
  %s5 = ssub.s32 1, %s3
  %s6 = scalar_select 0, %s5, %s3
  $region1: #{tpu_custom_call.1} parent=0
    #allocation4 [shape = 'u8[8192]{0}', space=vmem, size = 0x2000, scoped, tag = 'input window, operand 0, single buffered']
    #allocation5 [shape = 's32[1]{0}', space=sflag, size = 0x4, scoped, tag = 'scoped memory for tpu_custom_call.1']
    #allocation6 [shape = 's32[1]{0}', space=sflag, size = 0x4, scoped, tag = 'scoped memory for tpu_custom_call.1']
    #allocation7 [shape = 'u8[8192]{0}', space=vmem, size = 0x2000, scoped, tag = 'input window, operand 1, single buffered']
    #allocation8 [shape = 's32[1]{0}', space=sflag, size = 0x4, scoped, tag = 'scoped memory for tpu_custom_call.1']
    #allocation9 [shape = 'u8[512]{0}', space=vmem, size = 0x400, scoped, tag = 'output window, operand 0, single buffered']
    %7 = vsyncpa [#allocation5], 0
    %8 = vsyncpa [#allocation8], 0
    %9 = vsyncpa [#allocation6], 0
    // Predicated region
    $region2: #{tpu_custom_call.1} parent=1 // pred_check
      _
    $region3: #{tpu_custom_call.1} parent=1 // pred_check_branch
      %11 = sbr.rel (0) target = $region5
    $region4: #{tpu_custom_call.1} parent=1 // pred_region
      %s13 = ssub.s32 256, 256
      %14 = vsyncadd [#allocation5], %s13
      %s16 = sshll.u32 [#allocation4], 4
      %s17 = int_to_ptr.vmem [resolvable:$true] %s16
      %19 = dma.hbm_to_vmem [thread:$0]  %s0, 256, %s17, [#allocation5]
    $region5: #{tpu_custom_call.1} parent=1 // pred_fallthru
      _
    // Predicated region
    $region6: #{tpu_custom_call.1} parent=1 // pred_check
      _
    $region7: #{tpu_custom_call.1} parent=1 // pred_check_branch
      %21 = sbr.rel (0) target = $region9
    $region8: #{tpu_custom_call.1} parent=1 // pred_region
      %s23 = ssub.s32 256, 256
      %24 = vsyncadd [#allocation8], %s23
      %s26 = sshll.u32 [#allocation7], 4
      %s27 = int_to_ptr.vmem [resolvable:$true] %s26
      %29 = dma.hbm_to_vmem [thread:$0]  %s1, 256, %s27, [#allocation8]
    $region9: #{tpu_custom_call.1} parent=1 // pred_fallthru
      _
    // Predicated region
    $region10: #{tpu_custom_call.1} parent=1 // pred_check
      _
    $region11: #{tpu_custom_call.1} parent=1 // pred_check_branch
      %31 = sbr.rel (0) target = $region13
    $region12: #{tpu_custom_call.1} parent=1 // pred_region
      %32 = dma.done [#allocation5], 256
    $region13: #{tpu_custom_call.1} parent=1 // pred_fallthru
      _
    // Predicated region
    $region14: #{tpu_custom_call.1} parent=1 // pred_check
      _
    $region15: #{tpu_custom_call.1} parent=1 // pred_check_branch
      %34 = sbr.rel (0) target = $region17
    $region16: #{tpu_custom_call.1} parent=1 // pred_region
      %35 = dma.done [#allocation8], 256
    $region17: #{tpu_custom_call.1} parent=1 // pred_fallthru
      _
    %p36 = scmp.eq.s32.totalorder 0, 0
    // Predicated region
    $region18: #{tpu_custom_call.1} parent=1 // pred_check
      %p37 = pneg %p36
    $region19: #{tpu_custom_call.1} parent=1 // pred_check_branch
      %39 = sbr.rel (%p37) target = $region21
    $region20: #{tpu_custom_call.1} parent=1 // pred_region
      %vm40 = vcmask 0
      %41 = vst.msk [vmem:[#allocation2] sm:$0x1] %vm40, 0.0
      %42 = vst.msk [vmem:[#allocation3] sm:$0x1] %vm40, 0.0
    $region21: #{tpu_custom_call.1} parent=1 // pred_fallthru
      _
    %v43 = vld [vmem:[#allocation4] sm:$0xff]
    %v44 = vld [vmem:[#allocation4 + $0x8] sm:$0xff]
    %v45 = vld [vmem:[#allocation7] sm:$0xff]
    %v46 = vld [vmem:[#allocation7 + $0x8] sm:$0xff]
    %v47 = vsub.f32 %v43, %v45
    %v48 = vsub.f32 %v44, %v46
    %v49 = vmul.f32 %v47, %v47
    %v50 = vmul.f32 %v48, %v48
    %v51 = vld [vmem:[#allocation2] sm:$0x1]
    %52 = vadd.xlane.f32.xlu0 %v49
    %v53 = vpop.xlane.xlu0 %52
    %v54 = vrot.slane %v53, 4
    %v55 = vadd.f32 %v53, %v54
    %v56 = vrot.slane %v55, 2
    %v57 = vadd.f32 %v55, %v56
    %v58 = vrot.slane %v57, 1
    %v59 = vadd.f32 %v57, %v58
    %s60 = vtos %v59
    %v61 = vstv %s60
    %v62 = vadd.f32 %v51, %v61
    %vm63 = vcmask 0
    %64 = vst.msk [vmem:[#allocation2] sm:$0x1] %vm63, %v62
    %v65 = vld [vmem:[#allocation3] sm:$0x1]
    %66 = vadd.xlane.f32.xlu0 %v50
    %v67 = vpop.xlane.xlu0 %66
    %v68 = vrot.slane %v67, 4
    %v69 = vadd.f32 %v67, %v68
    %v70 = vrot.slane %v69, 2
    %v71 = vadd.f32 %v69, %v70
    %v72 = vrot.slane %v71, 1
    %v73 = vadd.f32 %v71, %v72
    %s74 = vtos %v73
    %v75 = vstv %s74
    %v76 = vadd.f32 %v65, %v75
    %77 = vst.msk [vmem:[#allocation3] sm:$0x1] %vm63, %v76
    // Predicated region
    $region22: #{tpu_custom_call.1} parent=1 // pred_check
      %p78 = pneg %p36
    $region23: #{tpu_custom_call.1} parent=1 // pred_check_branch
      %80 = sbr.rel (%p78) target = $region25
    $region24: #{tpu_custom_call.1} parent=1 // pred_region
      %v81 = vld [vmem:[#allocation2] sm:$0x1]
      %v82 = vmul.f32 %v81, 0.0029296875
      %v83 = vld [vmem:[#allocation3] sm:$0x1]
      %v84 = vmul.f32 %v83, 0.0068359375
      %v85 = vadd.f32 %v82, %v84
      %86 = vst.msk [vmem:[#allocation9] sm:$0x1] %vm63, %v85
    $region25: #{tpu_custom_call.1} parent=1 // pred_fallthru
      _
    // Predicated region
    $region26: #{tpu_custom_call.1} parent=1 // pred_check
      _
    $region27: #{tpu_custom_call.1} parent=1 // pred_check_branch
      %88 = sbr.rel (0) target = $region29
    $region28: #{tpu_custom_call.1} parent=1 // pred_region
      %s90 = ssub.s32 16, 16
      %91 = vsyncadd [#allocation6], %s90
      %s93 = sshll.u32 [#allocation9], 4
      %s94 = int_to_ptr.vmem [resolvable:$true] %s93
      %96 = dma.vmem_to_hbm [thread:$0]  %s94, 16, %s2, [#allocation6]
    $region29: #{tpu_custom_call.1} parent=1 // pred_fallthru
      _
    // Predicated region
    $region30: #{tpu_custom_call.1} parent=1 // pred_check
      _
    $region31: #{tpu_custom_call.1} parent=1 // pred_check_branch
      %98 = sbr.rel (0) target = $region33
    $region32: #{tpu_custom_call.1} parent=1 // pred_region
      %99 = dma.done [#allocation6], 16
    $region33: #{tpu_custom_call.1} parent=1 // pred_fallthru
      _
    %100 = vsyncpa [#allocation5], 1
    %101 = vsyncpa [#allocation8], 1
    %102 = vsyncpa [#allocation6], 1

</llo_original>
